<compile_context>
chip_gen: v6e
topology: v6e:2x2x1
jax: 0.10.0
libtpu: 0.0.40
codegen_flags: <defaults>
</compile_context>

<pallas_src>
import functools

import jax
import jax.numpy as jnp
from jax.experimental import pallas as pl
from jax.experimental.pallas import tpu as pltpu


def _round_up(x, m):
    return ((x + m - 1) // m) * m


# ---------------------------------------------------------------------------
# Fast path: whole bag resident in VMEM; one fused step per A tile.
# ---------------------------------------------------------------------------
def _omics_attention_resident_kernel(x_ref, w_ref, b_ref, o_ref, *, n_valid):
    # x_ref: (n_pad, F_pad)   w_ref: (F_pad, tile_a)   b_ref: (1, tile_a)   o_ref: (n_pad, tile_a)
    x = x_ref[...].astype(jnp.float32)
    w = w_ref[...].astype(jnp.float32)
    b = b_ref[...].astype(jnp.float32)

    h = jnp.dot(x, w, preferred_element_type=jnp.float32) + b      # (n_pad, tile_a)
    a = jnp.tanh(h)

    # Zero-padded rows must not contribute to the dim-0 softmax.
    row = jax.lax.broadcasted_iota(jnp.int32, a.shape, 0)
    a = jnp.where(row < n_valid, a, -jnp.inf)

    m = jnp.max(a, axis=0, keepdims=True)                          # (1, tile_a)
    e = jnp.exp(a - m)
    s = jnp.sum(e, axis=0, keepdims=True)
    inv = pl.reciprocal(s, approx=True)                            # s >= 1 (stable softmax)
    o_ref[...] = (e * inv * h).astype(o_ref.dtype)


# ---------------------------------------------------------------------------
# Fallback path: two-pass online softmax over N tiles (bags too big for VMEM).
# ---------------------------------------------------------------------------
def _omics_attention_tiled_kernel(x_ref, w_ref, b_ref, o_ref, m_ref, s_ref, *, n_valid, tile_n):
    # x_ref: (tile_n, F_pad)   w_ref: (F_pad, tile_a)   b_ref: (1, tile_a)   o_ref: (tile_n, tile_a)
    # m_ref / s_ref: (1, tile_a) running per-column max / exp-sum (persist across grid steps)
    p = pl.program_id(1)   # 0 = softmax-stats pass, 1 = normalize + write pass
    n = pl.program_id(2)   # N-tile index

    x = x_ref[...].astype(jnp.float32)
    w = w_ref[...].astype(jnp.float32)
    b = b_ref[...].astype(jnp.float32)

    h = jnp.dot(x, w, preferred_element_type=jnp.float32) + b      # (tile_n, tile_a)
    a = jnp.tanh(h)

    # Mask padded rows so they contribute nothing to the dim-0 softmax statistics.
    row = n * tile_n + jax.lax.broadcasted_iota(jnp.int32, a.shape, 0)
    a = jnp.where(row < n_valid, a, -jnp.inf)

    @pl.when(jnp.logical_and(p == 0, n == 0))
    def _init():
        m_ref[...] = jnp.full_like(m_ref, -jnp.inf)
        s_ref[...] = jnp.zeros_like(s_ref)

    @pl.when(p == 0)
    def _stats():
        m_old = m_ref[...]
        m_new = jnp.maximum(m_old, jnp.max(a, axis=0, keepdims=True))
        alpha = jnp.exp(m_old - m_new)
        s_ref[...] = alpha * s_ref[...] + jnp.sum(jnp.exp(a - m_new), axis=0, keepdims=True)
        m_ref[...] = m_new

    @pl.when(p == 1)
    def _write():
        inv = pl.reciprocal(s_ref[...], approx=True)
        attn = jnp.exp(a - m_ref[...]) * inv
        o_ref[...] = (attn * h).astype(o_ref.dtype)


def omics_attention(features, weight, bias, *, tile_n=None, force_two_pass=False):
    """features: (N, F), weight: (A, F) [nn.Linear layout], bias: (A,) -> (N, A)."""
    N, F = features.shape
    A = weight.shape[0]
    f_pad = _round_up(F, 128)

    # ---------------- fast resident path ----------------
    n_pad8 = _round_up(N, 8)
    tile_a_res = min(_round_up(A, 128), 256)
    a_pad_res = _round_up(A, tile_a_res)
    # x (double-buffered spec), w tile, out tile, plus in-register/VMEM temporaries (h, a, e, ...).
    footprint = 4 * (2 * n_pad8 * f_pad + 2 * f_pad * tile_a_res
                     + 6 * n_pad8 * tile_a_res + 2 * tile_a_res)
    use_resident = (not force_two_pass) and (tile_n is None) and footprint <= 24 * 2**20

    if use_resident:
        x = jnp.zeros((n_pad8, f_pad), features.dtype).at[:N, :F].set(features)
        w_t = jnp.zeros((f_pad, a_pad_res), weight.dtype).at[:F, :A].set(weight.T)
        b = jnp.zeros((1, a_pad_res), bias.dtype).at[0, :A].set(bias)

        kernel = functools.partial(_omics_attention_resident_kernel, n_valid=N)
        cost = pl.CostEstimate(
            flops=2 * n_pad8 * f_pad * a_pad_res,
            transcendentals=2 * n_pad8 * a_pad_res,                    # tanh + exp, one pass
            bytes_accessed=4 * (n_pad8 * f_pad + f_pad * a_pad_res
                                + a_pad_res + n_pad8 * a_pad_res),
        )
        out = pl.pallas_call(
            kernel,
            out_shape=jax.ShapeDtypeStruct((n_pad8, a_pad_res), features.dtype),
            grid_spec=pltpu.PrefetchScalarGridSpec(
                num_scalar_prefetch=0,
                grid=(a_pad_res // tile_a_res,),
                in_specs=[
                    pl.BlockSpec((n_pad8, f_pad), lambda ai: (0, 0)),        # constant -> DMA'd once
                    pl.BlockSpec((f_pad, tile_a_res), lambda ai: (0, ai)),
                    pl.BlockSpec((1, tile_a_res), lambda ai: (0, ai)),
                ],
                out_specs=pl.BlockSpec((n_pad8, tile_a_res), lambda ai: (0, ai)),
            ),
            compiler_params=pltpu.CompilerParams(
                dimension_semantics=("parallel",),
                vmem_limit_bytes=int(min(32 * 2**20, max(16 * 2**20, 2 * footprint))),
            ),
            cost_estimate=cost,
        )(x, w_t, b)
        return out[:N, :A]

    # ---------------- tiled two-pass fallback ----------------
    tile_a = 128
    if tile_n is None:
        tile_n = min(256, _round_up(N, 8))
    tile_n = max(8, _round_up(tile_n, 8))

    n_pad = _round_up(N, tile_n)
    a_pad = _round_up(A, tile_a)

    x = jnp.zeros((n_pad, f_pad), features.dtype).at[:N, :F].set(features)
    w_t = jnp.zeros((f_pad, a_pad), weight.dtype).at[:F, :A].set(weight.T)
    b = jnp.zeros((1, a_pad), bias.dtype).at[0, :A].set(bias)

    grid = (a_pad // tile_a, 2, n_pad // tile_n)
    kernel = functools.partial(_omics_attention_tiled_kernel, n_valid=N, tile_n=tile_n)

    step_bytes = 2 * 4 * (tile_n * f_pad + f_pad * tile_a + tile_a + tile_n * tile_a)
    vmem_limit = int(min(32 * 2**20, max(16 * 2**20, 4 * step_bytes)))

    cost = pl.CostEstimate(
        flops=2 * 2 * n_pad * f_pad * a_pad,            # matmul is recomputed in both passes
        transcendentals=4 * n_pad * a_pad,              # tanh + exp, both passes
        bytes_accessed=4 * (2 * n_pad * f_pad + f_pad * a_pad + 2 * n_pad * a_pad),
    )

    out = pl.pallas_call(
        kernel,
        out_shape=jax.ShapeDtypeStruct((n_pad, a_pad), features.dtype),
        grid_spec=pltpu.PrefetchScalarGridSpec(
            num_scalar_prefetch=0,
            grid=grid,
            in_specs=[
                pl.BlockSpec((tile_n, f_pad), lambda ai, p, ni: (ni, 0)),
                pl.BlockSpec((f_pad, tile_a), lambda ai, p, ni: (0, ai)),
                pl.BlockSpec((1, tile_a), lambda ai, p, ni: (0, ai)),
            ],
            # During the stats pass (p == 0) park the output on block (0, ai) so no stale
            # writebacks are issued; the write pass (p == 1) fully overwrites every block.
            out_specs=pl.BlockSpec((tile_n, tile_a), lambda ai, p, ni: (p * ni, ai)),
            scratch_shapes=[
                pltpu.VMEM((1, tile_a), jnp.float32),   # running column max
                pltpu.VMEM((1, tile_a), jnp.float32),   # running column exp-sum
            ],
        ),
        compiler_params=pltpu.CompilerParams(
            dimension_semantics=("parallel", "arbitrary", "arbitrary"),
            vmem_limit_bytes=vmem_limit,
        ),
        cost_estimate=cost,
    )(x, w_t, b)
    return out[:N, :A]


def omics_attention_ref(features, weight, bias):
    h = features @ weight.T + bias
    a = jnp.tanh(h)
    attn = jax.nn.softmax(a, axis=0)
    return attn * h


if __name__ == "__main__":
    key = jax.random.PRNGKey(0)
    k1, k2, k3 = jax.random.split(key, 3)

    # Shapes consistent with PathOmics_Surv: feature_dim = omic_sizes[0] = 100,
    # attention_dim = size[2] = 256, with a small bag of N omic rows.
    N, feature_dim, attention_dim = 40, 100, 256

    features = jax.random.normal(k1, (N, feature_dim), dtype=jnp.float32)
    weight = jax.random.normal(k2, (attention_dim, feature_dim), dtype=jnp.float32) * 0.1
    bias = jax.random.normal(k3, (attention_dim,), dtype=jnp.float32) * 0.1

    ref = omics_attention_ref(features, weight, bias)

    # Fast resident path (default).
    out = jax.block_until_ready(omics_attention(features, weight, bias))
    assert out.shape == (N, attention_dim)
    assert jnp.allclose(out, ref, atol=5e-3, rtol=5e-3), "mismatch vs reference (resident path)"

    # Tiled two-pass fallback: tile_n=16 exercises the multi-tile online-softmax path
    # (n_pad=48 -> 3 N tiles, last one partially padded) and the 2-tile "parallel" A axis.
    out_t = jax.block_until_ready(omics_attention(features, weight, bias, tile_n=16))
    assert out_t.shape == (N, attention_dim)
    assert jnp.allclose(out_t, ref, atol=5e-3, rtol=5e-3), "mismatch vs reference (tiled path)"

    # Degenerate tiny shape (second omic network style input).
    f2 = jax.random.normal(k1, (8, 32), dtype=jnp.float32)
    w2 = jax.random.normal(k2, (16, 32), dtype=jnp.float32) * 0.1
    b2 = jax.random.normal(k3, (16,), dtype=jnp.float32) * 0.1
    out2 = jax.block_until_ready(omics_attention(f2, w2, b2))
    ref2 = omics_attention_ref(f2, w2, b2)
    assert out2.shape == (8, 16)
    assert jnp.allclose(out2, ref2, atol=5e-3, rtol=5e-3), "mismatch vs reference (small path)"

    print("KERNEL_OK")
</pallas_src>

<mosaic_0001>
module attributes {stable_mosaic.version = 11 : i64} {
  func.func @_omics_attention_resident_kernel(%arg0: i32, %arg1: memref<40x128xf32, #tpu.memory_space<vmem>>, %arg2: memref<128x256xf32, #tpu.memory_space<vmem>>, %arg3: memref<1x256xf32, #tpu.memory_space<vmem>>, %arg4: memref<40x256xf32, #tpu.memory_space<vmem>>) attributes {dimension_semantics = [#tpu.dimension_semantics<parallel>], iteration_bounds = array<i64: 1>, scalar_prefetch = 0 : i64, scratch_operands = 0 : i64, tpu.core_type = #tpu.core_type<tc>, window_params = [{pipeline_mode = #tpu.pipeline_mode<synchronous>, transform_indices = @transform_0, window_bounds = array<i64: 40, 128>}, {transform_indices = @transform_1, window_bounds = array<i64: 128, 256>}, {transform_indices = @transform_2, window_bounds = array<i64: 1, 256>}, {transform_indices = @transform_3, window_bounds = array<i64: 40, 256>}]} {
    %c0 = arith.constant 0 : index
    %c0_0 = arith.constant 0 : index
    %0 = vector.load %arg1[%c0, %c0_0] : memref<40x128xf32, #tpu.memory_space<vmem>>, vector<40x128xf32>
    %c0_1 = arith.constant 0 : index
    %c0_2 = arith.constant 0 : index
    %1 = vector.load %arg2[%c0_1, %c0_2] : memref<128x256xf32, #tpu.memory_space<vmem>>, vector<128x256xf32>
    %c0_3 = arith.constant 0 : index
    %c0_4 = arith.constant 0 : index
    %2 = vector.load %arg3[%c0_3, %c0_4] : memref<1x256xf32, #tpu.memory_space<vmem>>, vector<1x256xf32>
    %cst = arith.constant dense<0.000000e+00> : vector<40x256xf32>
    %3 = tpu.matmul %0, %1, %cst {dimension_numbers = #tpu.dot_dimension_numbers<[1], [0], [0], [1], [0, 0, 1, 1], [], []>} : vector<40x128xf32>, vector<128x256xf32>, vector<40x256xf32> -> vector<40x256xf32>
    %4 = vector.broadcast %2 : vector<1x256xf32> to vector<40x256xf32>
    %5 = arith.addf %3, %4 : vector<40x256xf32>
    %6 = math.tanh %5 : vector<40x256xf32>
    %7 = tpu.iota {dimensions = array<i32: 0>} : vector<40x256xi32>
    %c40_i32 = arith.constant 40 : i32
    %8 = vector.broadcast %c40_i32 : i32 to vector<40x256xi32>
    %9 = arith.cmpi slt, %7, %8 : vector<40x256xi32>
    %cst_5 = arith.constant 0xFF800000 : f32
    %10 = vector.broadcast %cst_5 : f32 to vector<40x256xf32>
    %11 = arith.select %9, %6, %10 : vector<40x256xi1>, vector<40x256xf32>
    %cst_6 = arith.constant dense<0xFF800000> : vector<256xf32>
    %12 = vector.multi_reduction <maximumf>, %11, %cst_6 [0] : vector<40x256xf32> to vector<256xf32>
    %13 = vector.shape_cast %12 : vector<256xf32> to vector<1x256xf32>
    %14 = vector.broadcast %13 : vector<1x256xf32> to vector<40x256xf32>
    %15 = arith.subf %11, %14 : vector<40x256xf32>
    %16 = math.exp %15 : vector<40x256xf32>
    %cst_7 = arith.constant dense<0.000000e+00> : vector<256xf32>
    %17 = vector.multi_reduction <add>, %16, %cst_7 [0] : vector<40x256xf32> to vector<256xf32>
    %18 = vector.shape_cast %17 : vector<256xf32> to vector<1x256xf32>
    %19 = tpu.reciprocal %18 {approx = true} : vector<1x256xf32> -> vector<1x256xf32>
    %20 = vector.broadcast %19 : vector<1x256xf32> to vector<40x256xf32>
    %21 = arith.mulf %16, %20 : vector<40x256xf32>
    %22 = arith.mulf %21, %5 : vector<40x256xf32>
    %c0_8 = arith.constant 0 : index
    %c0_9 = arith.constant 0 : index
    %23 = vector.load %arg4[%c0_8, %c0_9] : memref<40x256xf32, #tpu.memory_space<vmem>>, vector<40x256xf32>
    tpu.vector_store %arg4[%c0_8, %c0_9], %22 {strides = array<i32>} : memref<40x256xf32, #tpu.memory_space<vmem>>, vector<40x256xf32>,
    return
  }
  func.func @transform_0(%arg0: i32) -> (i32, i32) {
    %c0_i32 = arith.constant 0 : i32
    %c0_i32_0 = arith.constant 0 : i32
    %c0_i32_1 = arith.constant 0 : i32
    return %c0_i32, %c0_i32_0 : i32, i32
  }
  func.func @transform_1(%arg0: i32) -> (i32, i32) {
    %c0_i32 = arith.constant 0 : i32
    %c0_i32_0 = arith.constant 0 : i32
    return %c0_i32, %arg0 : i32, i32
  }
  func.func @transform_2(%arg0: i32) -> (i32, i32) {
    %c0_i32 = arith.constant 0 : i32
    %c0_i32_0 = arith.constant 0 : i32
    return %c0_i32, %arg0 : i32, i32
  }
  func.func @transform_3(%arg0: i32) -> (i32, i32) {
    %c0_i32 = arith.constant 0 : i32
    %c0_i32_0 = arith.constant 0 : i32
    return %c0_i32, %arg0 : i32, i32
  }
}

</mosaic_0001>

<llo_original>
// kernel: tpu_custom_call.1
$region0: #{tpu_custom_call.1}
  #allocation0 [shape = 'u32[]', space=smem, size = 0x4, offset = 0x4, fixed_abs, tag = 'smem constant byte address 0x4 - core index']
  #allocation1 [shape = 'u32[144,128]{1,0:T(1,128)}', space=vmem, size = 0x12000, scoped, tag = 'internal scratch']
  %s0 = inlined_call_operand.hbm [shape: f32[40,128], index: 0, kind: input, shape index: {}]
  %s1 = inlined_call_operand.hbm [shape: f32[128,256], index: 1, kind: input, shape index: {}]
  %s2 = inlined_call_operand.vmem [shape: f32[1,256], index: 2, kind: input, shape index: {}]
  %s3 = inlined_call_operand.hbm [shape: f32[40,256], index: 3, kind: output, shape index: {}]
  %s4 = sld [smem:[#allocation0]]
  $region30: #{tpu_custom_call.1} parent=0
    _
  %s6 = ssub.s32 1, %s4
  %s7 = scalar_select 0, %s6, %s4
  $region1: #{tpu_custom_call.1} parent=0
    #allocation2 [shape = 'u8[20480]{0}', space=vmem, size = 0x5000, scoped, tag = 'input window, operand 0, single buffered']
    #allocation3 [shape = 's32[1]{0}', space=sflag, size = 0x4, scoped, tag = 'scoped memory for tpu_custom_call.1']
    #allocation4 [shape = 's32[1]{0}', space=sflag, size = 0x4, scoped, tag = 'scoped memory for tpu_custom_call.1']
    #allocation5 [shape = 'u8[131072]{0}', space=vmem, size = 0x20000, scoped, tag = 'input window, operand 1, single buffered']
    #allocation6 [shape = 's32[1]{0}', space=sflag, size = 0x4, scoped, tag = 'scoped memory for tpu_custom_call.1']
    #allocation7 [shape = 'u8[40960]{0}', space=vmem, size = 0xa000, scoped, tag = 'output window, operand 0, single buffered']
    %8 = vsyncpa [#allocation3], 0
    %9 = vsyncpa [#allocation6], 0
    %10 = vsyncpa [#allocation4], 0
    // Predicated region
    $region2: #{tpu_custom_call.1} parent=1 // pred_check
      _
    $region3: #{tpu_custom_call.1} parent=1 // pred_check_branch
      %12 = sbr.rel (0) target = $region5
    $region4: #{tpu_custom_call.1} parent=1 // pred_region
      %s14 = ssub.s32 640, 640
      %15 = vsyncadd [#allocation3], %s14
      %s16 = sshll.u32 [#allocation2], 4
      %s17 = int_to_ptr.vmem [resolvable:$true] %s16
      %22 = dma.hbm_to_vmem [thread:$0]  %s0, 640, %s17, [#allocation3], 128, 128, 8
    $region5: #{tpu_custom_call.1} parent=1 // pred_fallthru
      _
    // Predicated region
    $region6: #{tpu_custom_call.1} parent=1 // pred_check
      _
    $region7: #{tpu_custom_call.1} parent=1 // pred_check_branch
      %24 = sbr.rel (0) target = $region9
    $region8: #{tpu_custom_call.1} parent=1 // pred_region
      %s26 = ssub.s32 4096, 4096
      %27 = vsyncadd [#allocation6], %s26
      %s28 = sshll.u32 [#allocation5], 4
      %s29 = int_to_ptr.vmem [resolvable:$true] %s28
      %34 = dma.hbm_to_vmem [thread:$0]  %s1, 4096, %s29, [#allocation6], 256, 256, 16
    $region9: #{tpu_custom_call.1} parent=1 // pred_fallthru
      _
    // Predicated region
    $region10: #{tpu_custom_call.1} parent=1 // pred_check
      _
    $region11: #{tpu_custom_call.1} parent=1 // pred_check_branch
      %36 = sbr.rel (0) target = $region13
    $region12: #{tpu_custom_call.1} parent=1 // pred_region
      _
    $region13: #{tpu_custom_call.1} parent=1 // pred_fallthru
      _
    // Predicated region
    $region14: #{tpu_custom_call.1} parent=1 // pred_check
      _
    $region15: #{tpu_custom_call.1} parent=1 // pred_check_branch
      %38 = sbr.rel (0) target = $region17
    $region16: #{tpu_custom_call.1} parent=1 // pred_region
      %39 = dma.done [#allocation3], 640
    $region17: #{tpu_custom_call.1} parent=1 // pred_fallthru
      _
    // Predicated region
    $region18: #{tpu_custom_call.1} parent=1 // pred_check
      _
    $region19: #{tpu_custom_call.1} parent=1 // pred_check_branch
      %41 = sbr.rel (0) target = $region21
    $region20: #{tpu_custom_call.1} parent=1 // pred_region
      %42 = dma.done [#allocation6], 4096
    $region21: #{tpu_custom_call.1} parent=1 // pred_fallthru
      _
    %v43 = vld [vmem:[#allocation2] sm:$0xff]
    %v44 = vld [vmem:[#allocation2 + $0x8] sm:$0xff]
    %v45 = vld [vmem:[#allocation2 + $0x10] sm:$0xff]
    %v46 = vld [vmem:[#allocation2 + $0x18] sm:$0xff]
    %v47 = vld [vmem:[#allocation2 + $0x20] sm:$0xff]
    %v48 = vld [vmem:[#allocation5] sm:$0xff]
    %v49 = vld [vmem:[#allocation5 + $0x8] sm:$0xff]
    %v50 = vld [vmem:[#allocation5 + $0x10] sm:$0xff]
    %v51 = vld [vmem:[#allocation5 + $0x18] sm:$0xff]
    %v52 = vld [vmem:[#allocation5 + $0x20] sm:$0xff]
    %v53 = vld [vmem:[#allocation5 + $0x28] sm:$0xff]
    %v54 = vld [vmem:[#allocation5 + $0x30] sm:$0xff]
    %v55 = vld [vmem:[#allocation5 + $0x38] sm:$0xff]
    %v56 = vld [vmem:[#allocation5 + $0x40] sm:$0xff]
    %v57 = vld [vmem:[#allocation5 + $0x48] sm:$0xff]
    %v58 = vld [vmem:[#allocation5 + $0x50] sm:$0xff]
    %v59 = vld [vmem:[#allocation5 + $0x58] sm:$0xff]
    %v60 = vld [vmem:[#allocation5 + $0x60] sm:$0xff]
    %v61 = vld [vmem:[#allocation5 + $0x68] sm:$0xff]
    %v62 = vld [vmem:[#allocation5 + $0x70] sm:$0xff]
    %v63 = vld [vmem:[#allocation5 + $0x78] sm:$0xff]
    %v64 = vld [vmem:[#allocation5 + $0x80] sm:$0xff]
    %v65 = vld [vmem:[#allocation5 + $0x88] sm:$0xff]
    %v66 = vld [vmem:[#allocation5 + $0x90] sm:$0xff]
    %v67 = vld [vmem:[#allocation5 + $0x98] sm:$0xff]
    %v68 = vld [vmem:[#allocation5 + $0xa0] sm:$0xff]
    %v69 = vld [vmem:[#allocation5 + $0xa8] sm:$0xff]
    %v70 = vld [vmem:[#allocation5 + $0xb0] sm:$0xff]
    %v71 = vld [vmem:[#allocation5 + $0xb8] sm:$0xff]
    %v72 = vld [vmem:[#allocation5 + $0xc0] sm:$0xff]
    %v73 = vld [vmem:[#allocation5 + $0xc8] sm:$0xff]
    %v74 = vld [vmem:[#allocation5 + $0xd0] sm:$0xff]
    %v75 = vld [vmem:[#allocation5 + $0xd8] sm:$0xff]
    %v76 = vld [vmem:[#allocation5 + $0xe0] sm:$0xff]
    %v77 = vld [vmem:[#allocation5 + $0xe8] sm:$0xff]
    %v78 = vld [vmem:[#allocation5 + $0xf0] sm:$0xff]
    %v79 = vld [vmem:[#allocation5 + $0xf8] sm:$0xff]
    %v80 = vld [vmem:[%s2] sm:$0x3]
    %v82 = vlaneseq
    %v83 = vshrl.u32 %v82, 7
    %v84 = vsub.s32 0, %v83
    %v85 = vrot.slane %v80, %v84
    %v86 = vlaneseq
    %v87 = vshrl.u32 %v86, 7
    %v88 = vsub.s32 1, %v87
    %v89 = vrot.slane %v80, %v88
    %92 = vmatprep.subr.mxu0 %v79
    %93 = vmatpush1.msra.mxu0 %v78
    %94 = vmatprep.subr.mxu0 %v77
    %95 = vmatpush1.msra.mxu0 %v76
    %96 = vmatprep.subr.mxu0 %v75
    %97 = vmatpush1.msra.mxu0 %v74
    %98 = vmatprep.subr.mxu0 %v73
    %99 = vmatpush1.msra.mxu0 %v72
    %100 = vmatprep.subr.mxu0 %v71
    %101 = vmatpush1.msra.mxu0 %v70
    %102 = vmatprep.subr.mxu0 %v69
    %103 = vmatpush1.msra.mxu0 %v68
    %104 = vmatprep.subr.mxu0 %v67
    %105 = vmatpush1.msra.mxu0 %v66
    %106 = vmatprep.subr.mxu0 %v65
    %107 = vmatpush1.msra.mxu0 %v64
    %108 = vmatprep.subr.mxu0 %v63
    %109 = vmatpush1.msra.mxu0 %v62
    %110 = vmatprep.subr.mxu0 %v61
    %111 = vmatpush1.msra.mxu0 %v60
    %112 = vmatprep.subr.mxu0 %v59
    %113 = vmatpush1.msra.mxu0 %v58
    %114 = vmatprep.subr.mxu0 %v57
    %115 = vmatpush1.msra.mxu0 %v56
    %116 = vmatprep.subr.mxu0 %v55
    %117 = vmatpush1.msra.mxu0 %v54
    %118 = vmatprep.subr.mxu0 %v53
    %119 = vmatpush1.msra.mxu0 %v52
    %120 = vmatprep.subr.mxu0 %v51
    %121 = vmatpush1.msra.mxu0 %v50
    %122 = vmatprep.subr.mxu0 %v49
    %123 = vmatpush1.msra.mxu0 %v48
    %124 = vmatprep.subr.mxu0 0.0
    %125 = vmatpush2.msra.mxu0 0.0
    %126 = vmatprep.subr.mxu0 0.0
    %127 = vmatpush2.msra.mxu0 0.0
    %128 = vmatprep.subr.mxu0 0.0
    %129 = vmatpush2.msra.mxu0 0.0
    %130 = vmatprep.subr.mxu0 0.0
    %131 = vmatpush2.msra.mxu0 0.0
    %132 = vmatprep.subr.mxu0 0.0
    %133 = vmatpush2.msra.mxu0 0.0
    %134 = vmatprep.subr.mxu0 0.0
    %135 = vmatpush2.msra.mxu0 0.0
    %136 = vmatprep.subr.mxu0 0.0
    %137 = vmatpush2.msra.mxu0 0.0
    %138 = vmatprep.subr.mxu0 0.0
    %139 = vmatpush2.msra.mxu0 0.0
    %140 = vmatprep.subr.mxu0 0.0
    %141 = vmatpush2.msra.mxu0 0.0
    %142 = vmatprep.subr.mxu0 0.0
    %143 = vmatpush2.msra.mxu0 0.0
    %144 = vmatprep.subr.mxu0 0.0
    %145 = vmatpush2.msra.mxu0 0.0
    %146 = vmatprep.subr.mxu0 0.0
    %147 = vmatpush2.msra.mxu0 0.0
    %148 = vmatprep.subr.mxu0 0.0
    %149 = vmatpush2.msra.mxu0 0.0
    %150 = vmatprep.subr.mxu0 0.0
    %151 = vmatpush2.msra.mxu0 0.0
    %152 = vmatprep.subr.mxu0 0.0
    %153 = vmatpush2.msra.mxu0 0.0
    %154 = vmatprep.subr.mxu0 0.0
    %155 = vmatpush2.msra.mxu0 0.0
    %156 = vmatprep.mubr.f32.mxu0 0.0
    %157 = vmatmul.mubr.f32.gmra.mxu0 %v43
    %v158 = vpop.f32.mrf.mxu0
    %v159 = vadd.f32 %v85, %v158
    %v160 = vpop.f32.mrf.mxu0
    %v161 = vadd.f32 %v89, %v160
    %162 = vmatprep.mubr.f32.mxu0 0.0
    %163 = vmatmul.mubr.f32.gmra.mxu0 %v44
    %v164 = vpop.f32.mrf.mxu0
    %v165 = vadd.f32 %v85, %v164
    %v166 = vpop.f32.mrf.mxu0
    %v167 = vadd.f32 %v89, %v166
    %168 = vmatprep.mubr.f32.mxu0 0.0
    %169 = vmatmul.mubr.f32.gmra.mxu0 %v45
    %v170 = vpop.f32.mrf.mxu0
    %v171 = vadd.f32 %v85, %v170
    %v172 = vpop.f32.mrf.mxu0
    %v173 = vadd.f32 %v89, %v172
    %174 = vmatprep.mubr.f32.mxu0 0.0
    %175 = vmatmul.mubr.f32.gmra.mxu0 %v46
    %v176 = vpop.f32.mrf.mxu0
    %v177 = vadd.f32 %v85, %v176
    %v178 = vpop.f32.mrf.mxu0
    %v179 = vadd.f32 %v89, %v178
    %180 = vmatprep.mubr.f32.mxu0 0.0
    %181 = vmatmul.mubr.f32.gmra.mxu0 %v47
    %v182 = vpop.f32.mrf.mxu0
    %v183 = vadd.f32 %v85, %v182
    %v184 = vpop.f32.mrf.mxu0
    %v185 = vadd.f32 %v89, %v184
    %186 = vdwg.mxu0
    %v187 = vtanh.pop %v159
    %v188 = vtanh.pop %v161
    %v189 = vtanh.pop %v165
    %v190 = vtanh.pop %v167
    %v191 = vtanh.pop %v171
    %v192 = vtanh.pop %v173
    %v193 = vtanh.pop %v177
    %v194 = vtanh.pop %v179
    %v195 = vtanh.pop %v183
    %v196 = vtanh.pop %v185
    %v197 = vlaneseq
    %v198 = vshrl.u32 %v197, 7
    %v199 = vadd.s32 %v198, 8
    %v200 = vadd.s32 %v198, 16
    %v201 = vadd.s32 %v198, 24
    %v202 = vadd.s32 %v198, 32
    %vm203 = vcmp.lt.s32.totalorder %v198, 40
    %vm204 = vcmp.lt.s32.totalorder %v199, 40
    %vm205 = vcmp.lt.s32.totalorder %v200, 40
    %vm206 = vcmp.lt.s32.totalorder %v201, 40
    %vm207 = vcmp.lt.s32.totalorder %v202, 40
    %v208 = vsel %vm203, %v187, -inf
    %v209 = vsel %vm203, %v188, -inf
    %v210 = vsel %vm204, %v189, -inf
    %v211 = vsel %vm204, %v190, -inf
    %v212 = vsel %vm205, %v191, -inf
    %v213 = vsel %vm205, %v192, -inf
    %v214 = vsel %vm206, %v193, -inf
    %v215 = vsel %vm206, %v194, -inf
    %v216 = vsel %vm207, %v195, -inf
    %v217 = vsel %vm207, %v196, -inf
    %v218 = vmax.f32 %v208, %v212
    %v219 = vmax.f32 %v210, %v214
    %v220 = vmax.f32 %v218, %v216
    %v221 = vmax.f32 %v220, %v219
    %v222 = vrot.slane %v221, 4
    %v223 = vmax.f32 %v221, %v222
    %v224 = vrot.slane %v223, 2
    %v225 = vmax.f32 %v223, %v224
    %v226 = vrot.slane %v225, 1
    %v227 = vmax.f32 %v225, %v226
    %v228 = vmax.f32 %v209, %v213
    %v229 = vmax.f32 %v211, %v215
    %v230 = vmax.f32 %v228, %v217
    %v231 = vmax.f32 %v230, %v229
    %v232 = vrot.slane %v231, 4
    %v233 = vmax.f32 %v231, %v232
    %v234 = vrot.slane %v233, 2
    %v235 = vmax.f32 %v233, %v234
    %v236 = vrot.slane %v235, 1
    %v237 = vmax.f32 %v235, %v236
    %v238 = vsub.f32 %v208, %v227
    %v239 = vsub.f32 %v209, %v237
    %v240 = vsub.f32 %v210, %v227
    %v241 = vsub.f32 %v211, %v237
    %v242 = vsub.f32 %v212, %v227
    %v243 = vsub.f32 %v213, %v237
    %v244 = vsub.f32 %v214, %v227
    %v245 = vsub.f32 %v215, %v237
    %v246 = vsub.f32 %v216, %v227
    %v247 = vsub.f32 %v217, %v237
    %v248 = vmul.f32 %v238, 1.442695
    %v249 = vpow.pop %v248
    %v250 = vmul.f32 %v239, 1.442695
    %v251 = vpow.pop %v250
    %v252 = vmul.f32 %v240, 1.442695
    %v253 = vpow.pop %v252
    %v254 = vmul.f32 %v241, 1.442695
    %v255 = vpow.pop %v254
    %v256 = vmul.f32 %v242, 1.442695
    %v257 = vpow.pop %v256
    %v258 = vmul.f32 %v243, 1.442695
    %v259 = vpow.pop %v258
    %v260 = vmul.f32 %v244, 1.442695
    %v261 = vpow.pop %v260
    %v262 = vmul.f32 %v245, 1.442695
    %v263 = vpow.pop %v262
    %v264 = vmul.f32 %v246, 1.442695
    %v265 = vpow.pop %v264
    %v266 = vmul.f32 %v247, 1.442695
    %v267 = vpow.pop %v266
    %v268 = vadd.f32 %v249, %v253
    %v269 = vadd.f32 %v268, %v257
    %v270 = vadd.f32 %v269, %v261
    %v271 = vadd.f32 %v270, %v265
    %v272 = vrot.slane %v271, 4
    %v273 = vadd.f32 %v271, %v272
    %v274 = vrot.slane %v273, 2
    %v275 = vadd.f32 %v273, %v274
    %v276 = vrot.slane %v275, 1
    %v277 = vadd.f32 %v275, %v276
    %v278 = vadd.f32 %v251, %v255
    %v279 = vadd.f32 %v278, %v259
    %v280 = vadd.f32 %v279, %v263
    %v281 = vadd.f32 %v280, %v267
    %v282 = vrot.slane %v281, 4
    %v283 = vadd.f32 %v281, %v282
    %v284 = vrot.slane %v283, 2
    %v285 = vadd.f32 %v283, %v284
    %v286 = vrot.slane %v285, 1
    %v287 = vadd.f32 %v285, %v286
    %v288 = vrcp.pop %v277
    %v289 = vrcp.pop %v287
    %v290 = vmul.f32 %v249, %v288
    %v291 = vmul.f32 %v251, %v289
    %v292 = vmul.f32 %v253, %v288
    %v293 = vmul.f32 %v255, %v289
    %v294 = vmul.f32 %v257, %v288
    %v295 = vmul.f32 %v259, %v289
    %v296 = vmul.f32 %v261, %v288
    %v297 = vmul.f32 %v263, %v289
    %v298 = vmul.f32 %v265, %v288
    %v299 = vmul.f32 %v267, %v289
    %v300 = vmul.f32 %v290, %v159
    %v301 = vmul.f32 %v291, %v161
    %v302 = vmul.f32 %v292, %v165
    %v303 = vmul.f32 %v293, %v167
    %v304 = vmul.f32 %v294, %v171
    %v305 = vmul.f32 %v295, %v173
    %v306 = vmul.f32 %v296, %v177
    %v307 = vmul.f32 %v297, %v179
    %v308 = vmul.f32 %v298, %v183
    %v309 = vmul.f32 %v299, %v185
    %310 = vst [vmem:[#allocation7] sm:$0xff] %v300
    %311 = vst [vmem:[#allocation7 + $0x8] sm:$0xff] %v301
    %312 = vst [vmem:[#allocation7 + $0x10] sm:$0xff] %v302
    %313 = vst [vmem:[#allocation7 + $0x18] sm:$0xff] %v303
    %314 = vst [vmem:[#allocation7 + $0x20] sm:$0xff] %v304
    %315 = vst [vmem:[#allocation7 + $0x28] sm:$0xff] %v305
    %316 = vst [vmem:[#allocation7 + $0x30] sm:$0xff] %v306
    %317 = vst [vmem:[#allocation7 + $0x38] sm:$0xff] %v307
    %318 = vst [vmem:[#allocation7 + $0x40] sm:$0xff] %v308
    %319 = vst [vmem:[#allocation7 + $0x48] sm:$0xff] %v309
    // Predicated region
    $region22: #{tpu_custom_call.1} parent=1 // pred_check
      _
    $region23: #{tpu_custom_call.1} parent=1 // pred_check_branch
      %321 = sbr.rel (0) target = $region25
    $region24: #{tpu_custom_call.1} parent=1 // pred_region
      %s323 = ssub.s32 1280, 1280
      %324 = vsyncadd [#allocation4], %s323
      %s325 = sshll.u32 [#allocation7], 4
      %s326 = int_to_ptr.vmem [resolvable:$true] %s325
      %331 = dma.vmem_to_hbm [thread:$0]  %s326, 1280, %s3, [#allocation4], 256, 256, 16
    $region25: #{tpu_custom_call.1} parent=1 // pred_fallthru
      _
    // Predicated region
    $region26: #{tpu_custom_call.1} parent=1 // pred_check
      _
    $region27: #{tpu_custom_call.1} parent=1 // pred_check_branch
      %333 = sbr.rel (0) target = $region29
    $region28: #{tpu_custom_call.1} parent=1 // pred_region
      %334 = dma.done [#allocation4], 1280
    $region29: #{tpu_custom_call.1} parent=1 // pred_fallthru
      _
    %335 = vsyncpa [#allocation3], 1
    %336 = vsyncpa [#allocation6], 1
    %337 = vsyncpa [#allocation4], 1

</llo_original>
